<compile_context>
chip_gen: v5e
topology: v5e:2x2
jax: 0.10.0
libtpu: 0.0.40
codegen_flags: <defaults>
</compile_context>

<pallas_src>
import functools

import jax
import jax.numpy as jnp
from jax.experimental import pallas as pl
from jax.experimental.pallas import tpu as pltpu

EPS = 1e-6


def _round_up(n: int, m: int) -> int:
    return ((n + m - 1) // m) * m


# --------------------------------------------------------------------------
# Fused kernel: all layers + final LayerNorm, activation resident in VMEM.
# --------------------------------------------------------------------------
def _fused_decoder_kernel(x_ref, w_ref, b_ref, fa_ref, fb_ref, o_ref, acc_ref,
                          *, approx):
    """Grid = (row_tiles, L).  Row axis "parallel", layer axis "arbitrary".

    x_ref  : (TILE, D)      activation row tile (DMA'd once per row tile)
    w_ref  : (1, D, D)      folded per-layer weight (alpha folded in), streamed
    b_ref  : (1, 1, D) f32  folded per-layer bias (beta folded in), streamed
    fa_ref : (1, D) f32     final LayerNorm alpha (broadcast row)
    fb_ref : (1, D) f32     final LayerNorm beta  (broadcast row)
    o_ref  : (TILE, D)      output row tile (written only on the last layer)
    acc_ref: (TILE, D) f32  VMEM-resident activation across the layer axis
    """
    l = pl.program_id(1)
    n_layers = pl.num_programs(1)

    @pl.when(l == 0)
    def _():
        acc_ref[...] = x_ref[...].astype(jnp.float32)

    x = acc_ref[...]
    D = x.shape[-1]

    # LayerNormalization: unbiased std (divide by D-1), denominator (std+eps);
    # the per-layer alpha/beta are already folded into w/b on the host.
    mean = jnp.mean(x, axis=-1, keepdims=True)
    diff = x - mean
    var = jnp.sum(diff * diff, axis=-1, keepdims=True) * (1.0 / (D - 1))
    inv = pl.reciprocal(jnp.sqrt(var) + EPS, approx=approx)   # EUP slot
    normed = diff * inv

    # Sublayer Linear on the MXU (bf16 inputs / f32 accumulation by default).
    sub = jnp.dot(normed.astype(w_ref.dtype), w_ref[0],
                  preferred_element_type=jnp.float32)
    x_new = x + sub + b_ref[0]                 # dropout = identity (eval)
    acc_ref[...] = x_new

    # Decoder's trailing LayerNormalization, fused into the last layer step.
    @pl.when(l == n_layers - 1)
    def _():
        mean2 = jnp.mean(x_new, axis=-1, keepdims=True)
        diff2 = x_new - mean2
        var2 = jnp.sum(diff2 * diff2, axis=-1, keepdims=True) * (1.0 / (D - 1))
        inv2 = pl.reciprocal(jnp.sqrt(var2) + EPS, approx=approx)
        o_ref[...] = (fa_ref[...] * diff2 * inv2 + fb_ref[...]).astype(o_ref.dtype)


# --------------------------------------------------------------------------
# Host-side parameter fold (run ONCE per parameter set, not per forward).
# --------------------------------------------------------------------------
def prepare_decoder_params(layer_ws, layer_bs, layer_alphas, layer_betas,
                           final_alpha, final_beta, *, mxu_dtype=jnp.bfloat16):
    """Fold each layer's LN affine into its Linear and stack for streaming.

    x + (a*LN0(x) + bt) @ w + b  ==  x + LN0(x) @ (a*w) + (b + bt*sum_k w[k,:])
    """
    D = int(jnp.asarray(layer_ws[0]).shape[0])
    w_fold, b_fold = [], []
    for w, b, a, bt in zip(layer_ws, layer_bs, layer_alphas, layer_betas):
        w32 = jnp.asarray(w, jnp.float32)
        w_fold.append((jnp.float32(a) * w32).astype(mxu_dtype))
        b_fold.append((jnp.asarray(b, jnp.float32)
                       + jnp.float32(bt) * jnp.sum(w32, axis=0)).reshape(1, D))
    w_stack = jnp.stack(w_fold)                      # (L, D, D)  mxu_dtype
    b_stack = jnp.stack(b_fold)                      # (L, 1, D)  f32
    fa_row = jnp.full((1, D), final_alpha, jnp.float32)
    fb_row = jnp.full((1, D), final_beta, jnp.float32)
    return w_stack, b_stack, fa_row, fb_row


def _plan_tile(rows: int, D: int, w_itemsize: int, row_tile: int):
    """Row tile (multiple of 8, >=2 grid steps when possible) + VMEM budget."""
    if rows >= 16:
        cap = _round_up(pl.cdiv(rows, 2), 8)   # >= 2 row tiles -> both v7x TCs busy
    else:
        cap = _round_up(max(rows, 1), 8)
    tile = max(8, min(_round_up(int(row_tile), 8), cap))

    budget = 56 << 20                          # headroom under v7x's 64 MiB VMEM

    def need(t):
        io = t * D * 4                         # one f32 (tile, D) buffer
        # 2x x-in + 2x out (double-buffered) + 1x acc scratch
        # + double-buffered streamed weight / bias + final rows.
        return 5 * io + 2 * D * D * w_itemsize + 6 * D * 4

    while tile > 8 and need(tile) > budget:
        tile = max(8, _round_up(tile // 2, 8))

    vmem_limit = int(min(max(need(tile) + (4 << 20), 32 << 20), budget))
    return tile, vmem_limit


# --------------------------------------------------------------------------
# Forward wrapper
# --------------------------------------------------------------------------
def decoder_forward(x, w_stack, b_stack, fa_row, fb_row, *,
                    row_tile=512, approx_recip=True):
    """x: (B, S, D).  w_stack: (L, D, D), b_stack: (L, 1, D),
    fa_row/fb_row: (1, D) final LayerNorm affine broadcast rows.
    encoder_output / src_mask / tgt_mask are unused by the placeholder
    sublayer (see TODO at the top)."""
    B, S, D = x.shape
    L = int(w_stack.shape[0])
    rows = B * S

    tile, vmem_limit = _plan_tile(rows, D, jnp.dtype(w_stack.dtype).itemsize,
                                  row_tile)
    rows_p = _round_up(rows, tile)

    x2 = x.reshape(rows, D).astype(jnp.float32)
    if rows_p != rows:
        # TODO(synk): replace host pad with an in-kernel partial trailing tile.
        x2 = jnp.pad(x2, ((0, rows_p - rows), (0, 0)))

    grid = (rows_p // tile, L)
    row_spec = pl.BlockSpec((tile, D), lambda i, l: (i, 0))

    out2 = pl.pallas_call(
        functools.partial(_fused_decoder_kernel, approx=approx_recip),
        out_shape=jax.ShapeDtypeStruct((rows_p, D), x.dtype),
        grid=grid,
        in_specs=[
            row_spec,                                          # x: 1 HBM read/tile
            pl.BlockSpec((1, D, D), lambda i, l: (l, 0, 0)),   # streamed weights
            pl.BlockSpec((1, 1, D), lambda i, l: (l, 0, 0)),   # streamed biases
            pl.BlockSpec((1, D), lambda i, l: (0, 0)),         # final LN alpha
            pl.BlockSpec((1, D), lambda i, l: (0, 0)),         # final LN beta
        ],
        out_specs=row_spec,                  # revisited across layer axis -> 1 write
        scratch_shapes=[pltpu.VMEM((tile, D), jnp.float32)],
        compiler_params=pltpu.CompilerParams(
            dimension_semantics=("parallel", "arbitrary"),
            vmem_limit_bytes=vmem_limit,
        ),
    )(x2, w_stack, b_stack, fa_row, fb_row)

    return out2[:rows].reshape(B, S, D)


# --------------------------------------------------------------------------
# Pure-JAX reference
# --------------------------------------------------------------------------
def _layernorm_ref(x, alpha, beta):
    D = x.shape[-1]
    mean = jnp.mean(x, axis=-1, keepdims=True)
    diff = x - mean
    std = jnp.sqrt(jnp.sum(diff * diff, axis=-1, keepdims=True) / (D - 1))
    return alpha * diff / (std + EPS) + beta


def decoder_reference(x, ws, bs, alphas, betas, falpha, fbeta):
    for w, b, a, bt in zip(ws, bs, alphas, betas):
        x = x + (_layernorm_ref(x, a, bt) @ w + b)   # dropout = identity (eval)
    return _layernorm_ref(x, falpha, fbeta)


if __name__ == "__main__":
    B, S, D, L = 2, 8, 128, 2   # batch, seq, d_model (lane-aligned), layers

    key = jax.random.PRNGKey(0)
    keys = jax.random.split(key, 2 * L + 1)
    x = jax.random.normal(keys[0], (B, S, D), dtype=jnp.float32)

    # Deterministic synthetic parameters.  LayerNormalization inits alpha=1,
    # bias=0; we use non-trivial values so the alpha/beta fold is exercised.
    ws, bs, alphas, betas = [], [], [], []
    for l in range(L):
        ws.append(jax.random.normal(keys[1 + 2 * l], (D, D), jnp.float32)
                  * (1.0 / D ** 0.5))
        bs.append(jax.random.normal(keys[2 + 2 * l], (D,), jnp.float32) * 0.01)
        alphas.append(jnp.float32(1.0 + 0.1 * (l + 1)))
        betas.append(jnp.float32(-0.05 * (l + 1)))
    final_alpha = jnp.float32(0.9)
    final_beta = jnp.float32(0.02)

    ref = decoder_reference(x, ws, bs, alphas, betas, final_alpha, final_beta)

    # Fast path: bf16 MXU inputs (f32 accumulation) + approx reciprocal.
    params_bf16 = prepare_decoder_params(ws, bs, alphas, betas,
                                         final_alpha, final_beta,
                                         mxu_dtype=jnp.bfloat16)
    out_fast = decoder_forward(x, *params_bf16, row_tile=512, approx_recip=True)
    out_fast = jax.block_until_ready(out_fast)
    assert out_fast.shape == (B, S, D)
    assert jnp.allclose(out_fast, ref, atol=2e-2, rtol=2e-2), \
        "bf16 path mismatch vs reference"

    # Pure-f32 path for a tight numerical check.
    params_f32 = prepare_decoder_params(ws, bs, alphas, betas,
                                        final_alpha, final_beta,
                                        mxu_dtype=jnp.float32)
    out_f32 = decoder_forward(x, *params_f32, row_tile=512, approx_recip=False)
    out_f32 = jax.block_until_ready(out_f32)
    assert jnp.allclose(out_f32, ref, atol=1e-3, rtol=1e-3), \
        "f32 path mismatch vs reference"

    print("KERNEL_OK")
</pallas_src>

<mosaic_0001>
module attributes {stable_mosaic.version = 11 : i64} {
  func.func @_fused_decoder_kernel(%arg0: i32, %arg1: i32, %arg2: memref<8x128xf32, #tpu.memory_space<vmem>>, %arg3: memref<1x128x128xbf16, #tpu.memory_space<vmem>>, %arg4: memref<1x1x128xf32, #tpu.memory_space<vmem>>, %arg5: memref<1x128xf32, #tpu.memory_space<vmem>>, %arg6: memref<1x128xf32, #tpu.memory_space<vmem>>, %arg7: memref<8x128xf32, #tpu.memory_space<vmem>>, %arg8: memref<8x128xf32, #tpu.memory_space<vmem>>) attributes {dimension_semantics = [#tpu.dimension_semantics<parallel>, #tpu.dimension_semantics<arbitrary>], iteration_bounds = array<i64: 2, 2>, scalar_prefetch = 0 : i64, scratch_operands = 1 : i64, tpu.core_type = #tpu.core_type<tc>, window_params = [{transform_indices = @transform_0, window_bounds = array<i64: 8, 128>}, {transform_indices = @transform_1, window_bounds = array<i64: 1, 128, 128>}, {transform_indices = @transform_2, window_bounds = array<i64: 1, 1, 128>}, {pipeline_mode = #tpu.pipeline_mode<synchronous>, transform_indices = @transform_3, window_bounds = array<i64: 1, 128>}, {pipeline_mode = #tpu.pipeline_mode<synchronous>, transform_indices = @transform_4, window_bounds = array<i64: 1, 128>}, {transform_indices = @transform_5, window_bounds = array<i64: 8, 128>}]} {
    %c0_i32 = arith.constant 0 : i32
    %0 = arith.cmpi eq, %arg1, %c0_i32 : i32
    %1 = arith.extui %0 : i1 to i32
    %c0_i32_0 = arith.constant 0 : i32
    %2 = arith.cmpi ne, %1, %c0_i32_0 : i32
    scf.if %2 {
      %c0_16 = arith.constant 0 : index
      %c0_17 = arith.constant 0 : index
      %34 = vector.load %arg2[%c0_16, %c0_17] : memref<8x128xf32, #tpu.memory_space<vmem>>, vector<8x128xf32>
      %c0_18 = arith.constant 0 : index
      %c0_19 = arith.constant 0 : index
      %35 = vector.load %arg8[%c0_18, %c0_19] : memref<8x128xf32, #tpu.memory_space<vmem>>, vector<8x128xf32>
      tpu.vector_store %arg8[%c0_18, %c0_19], %34 {strides = array<i32>} : memref<8x128xf32, #tpu.memory_space<vmem>>, vector<8x128xf32>,
    } else {
    }
    %c0 = arith.constant 0 : index
    %c0_1 = arith.constant 0 : index
    %3 = vector.load %arg8[%c0, %c0_1] : memref<8x128xf32, #tpu.memory_space<vmem>>, vector<8x128xf32>
    %cst = arith.constant dense<0.000000e+00> : vector<8xf32>
    %4 = vector.multi_reduction <add>, %3, %cst [1] : vector<8x128xf32> to vector<8xf32>
    %5 = vector.shape_cast %4 : vector<8xf32> to vector<8x1xf32>
    %cst_2 = arith.constant 1.280000e+02 : f32
    %6 = vector.broadcast %cst_2 : f32 to vector<8x1xf32>
    %7 = arith.divf %5, %6 : vector<8x1xf32>
    %8 = vector.broadcast %7 : vector<8x1xf32> to vector<8x128xf32>
    %9 = arith.subf %3, %8 : vector<8x128xf32>
    %10 = arith.mulf %9, %9 : vector<8x128xf32>
    %cst_3 = arith.constant dense<0.000000e+00> : vector<8xf32>
    %11 = vector.multi_reduction <add>, %10, %cst_3 [1] : vector<8x128xf32> to vector<8xf32>
    %12 = vector.shape_cast %11 : vector<8xf32> to vector<8x1xf32>
    %cst_4 = arith.constant 0.00787401571 : f32
    %13 = vector.broadcast %cst_4 : f32 to vector<8x1xf32>
    %14 = arith.mulf %12, %13 : vector<8x1xf32>
    %15 = math.sqrt %14 : vector<8x1xf32>
    %cst_5 = arith.constant 9.99999997E-7 : f32
    %16 = vector.broadcast %cst_5 : f32 to vector<8x1xf32>
    %17 = arith.addf %15, %16 : vector<8x1xf32>
    %18 = tpu.reciprocal %17 {approx = true} : vector<8x1xf32> -> vector<8x1xf32>
    %19 = vector.broadcast %18 : vector<8x1xf32> to vector<8x128xf32>
    %20 = arith.mulf %9, %19 : vector<8x128xf32>
    %21 = arith.truncf %20 : vector<8x128xf32> to vector<8x128xbf16>
    %c0_6 = arith.constant 0 : index
    %c0_7 = arith.constant 0 : index
    %c0_8 = arith.constant 0 : index
    %22 = vector.load %arg3[%c0_6, %c0_7, %c0_8] : memref<1x128x128xbf16, #tpu.memory_space<vmem>>, vector<1x128x128xbf16>
    %23 = vector.shape_cast %22 : vector<1x128x128xbf16> to vector<128x128xbf16>
    %cst_9 = arith.constant dense<0.000000e+00> : vector<8x128xf32>
    %24 = tpu.matmul %21, %23, %cst_9 {dimension_numbers = #tpu.dot_dimension_numbers<[1], [0], [0], [1], [0, 0, 1, 1], [], []>} : vector<8x128xbf16>, vector<128x128xbf16>, vector<8x128xf32> -> vector<8x128xf32>
    %25 = arith.addf %3, %24 : vector<8x128xf32>
    %c0_10 = arith.constant 0 : index
    %c0_11 = arith.constant 0 : index
    %c0_12 = arith.constant 0 : index
    %26 = vector.load %arg4[%c0_10, %c0_11, %c0_12] : memref<1x1x128xf32, #tpu.memory_space<vmem>>, vector<1x1x128xf32>
    %27 = vector.shape_cast %26 : vector<1x1x128xf32> to vector<1x128xf32>
    %28 = vector.broadcast %27 : vector<1x128xf32> to vector<8x128xf32>
    %29 = arith.addf %25, %28 : vector<8x128xf32>
    %c0_13 = arith.constant 0 : index
    %c0_14 = arith.constant 0 : index
    %30 = vector.load %arg8[%c0_13, %c0_14] : memref<8x128xf32, #tpu.memory_space<vmem>>, vector<8x128xf32>
    tpu.vector_store %arg8[%c0_13, %c0_14], %29 {strides = array<i32>} : memref<8x128xf32, #tpu.memory_space<vmem>>, vector<8x128xf32>,
    %c1_i32 = arith.constant 1 : i32
    %31 = arith.cmpi eq, %arg1, %c1_i32 : i32
    %32 = arith.extui %31 : i1 to i32
    %c0_i32_15 = arith.constant 0 : i32
    %33 = arith.cmpi ne, %32, %c0_i32_15 : i32
    scf.if %33 {
      %cst_16 = arith.constant dense<0.000000e+00> : vector<8xf32>
      %34 = vector.multi_reduction <add>, %29, %cst_16 [1] : vector<8x128xf32> to vector<8xf32>
      %35 = vector.shape_cast %34 : vector<8xf32> to vector<8x1xf32>
      %cst_17 = arith.constant 1.280000e+02 : f32
      %36 = vector.broadcast %cst_17 : f32 to vector<8x1xf32>
      %37 = arith.divf %35, %36 : vector<8x1xf32>
      %38 = vector.broadcast %37 : vector<8x1xf32> to vector<8x128xf32>
      %39 = arith.subf %29, %38 : vector<8x128xf32>
      %40 = arith.mulf %39, %39 : vector<8x128xf32>
      %cst_18 = arith.constant dense<0.000000e+00> : vector<8xf32>
      %41 = vector.multi_reduction <add>, %40, %cst_18 [1] : vector<8x128xf32> to vector<8xf32>
      %42 = vector.shape_cast %41 : vector<8xf32> to vector<8x1xf32>
      %cst_19 = arith.constant 0.00787401571 : f32
      %43 = vector.broadcast %cst_19 : f32 to vector<8x1xf32>
      %44 = arith.mulf %42, %43 : vector<8x1xf32>
      %45 = math.sqrt %44 : vector<8x1xf32>
      %cst_20 = arith.constant 9.99999997E-7 : f32
      %46 = vector.broadcast %cst_20 : f32 to vector<8x1xf32>
      %47 = arith.addf %45, %46 : vector<8x1xf32>
      %48 = tpu.reciprocal %47 {approx = true} : vector<8x1xf32> -> vector<8x1xf32>
      %c0_21 = arith.constant 0 : index
      %c0_22 = arith.constant 0 : index
      %49 = vector.load %arg5[%c0_21, %c0_22] : memref<1x128xf32, #tpu.memory_space<vmem>>, vector<1x128xf32>
      %50 = vector.broadcast %49 : vector<1x128xf32> to vector<8x128xf32>
      %51 = arith.mulf %50, %39 : vector<8x128xf32>
      %52 = vector.broadcast %48 : vector<8x1xf32> to vector<8x128xf32>
      %53 = arith.mulf %51, %52 : vector<8x128xf32>
      %c0_23 = arith.constant 0 : index
      %c0_24 = arith.constant 0 : index
      %54 = vector.load %arg6[%c0_23, %c0_24] : memref<1x128xf32, #tpu.memory_space<vmem>>, vector<1x128xf32>
      %55 = vector.broadcast %54 : vector<1x128xf32> to vector<8x128xf32>
      %56 = arith.addf %53, %55 : vector<8x128xf32>
      %c0_25 = arith.constant 0 : index
      %c0_26 = arith.constant 0 : index
      %57 = vector.load %arg7[%c0_25, %c0_26] : memref<8x128xf32, #tpu.memory_space<vmem>>, vector<8x128xf32>
      tpu.vector_store %arg7[%c0_25, %c0_26], %56 {strides = array<i32>} : memref<8x128xf32, #tpu.memory_space<vmem>>, vector<8x128xf32>,
    } else {
    }
    return
  }
  func.func @transform_0(%arg0: i32, %arg1: i32) -> (i32, i32) {
    %c0_i32 = arith.constant 0 : i32
    %c0_i32_0 = arith.constant 0 : i32
    return %arg0, %c0_i32 : i32, i32
  }
  func.func @transform_1(%arg0: i32, %arg1: i32) -> (i32, i32, i32) {
    %c0_i32 = arith.constant 0 : i32
    %c0_i32_0 = arith.constant 0 : i32
    %c0_i32_1 = arith.constant 0 : i32
    return %arg1, %c0_i32, %c0_i32_0 : i32, i32, i32
  }
  func.func @transform_2(%arg0: i32, %arg1: i32) -> (i32, i32, i32) {
    %c0_i32 = arith.constant 0 : i32
    %c0_i32_0 = arith.constant 0 : i32
    %c0_i32_1 = arith.constant 0 : i32
    return %arg1, %c0_i32, %c0_i32_0 : i32, i32, i32
  }
  func.func @transform_3(%arg0: i32, %arg1: i32) -> (i32, i32) {
    %c0_i32 = arith.constant 0 : i32
    %c0_i32_0 = arith.constant 0 : i32
    %c0_i32_1 = arith.constant 0 : i32
    return %c0_i32, %c0_i32_0 : i32, i32
  }
  func.func @transform_4(%arg0: i32, %arg1: i32) -> (i32, i32) {
    %c0_i32 = arith.constant 0 : i32
    %c0_i32_0 = arith.constant 0 : i32
    %c0_i32_1 = arith.constant 0 : i32
    return %c0_i32, %c0_i32_0 : i32, i32
  }
  func.func @transform_5(%arg0: i32, %arg1: i32) -> (i32, i32) {
    %c0_i32 = arith.constant 0 : i32
    %c0_i32_0 = arith.constant 0 : i32
    return %arg0, %c0_i32 : i32, i32
  }
}

</mosaic_0001>

<llo_original>
// kernel: tpu_custom_call.1
$region0: #{tpu_custom_call.1}
  #allocation0 [shape = 'u32[]', space=smem, size = 0x4, offset = 0x4, fixed_abs, tag = 'smem constant byte address 0x4 - core index']
  #allocation1 [shape = 'u32[72,128]{1,0:T(1,128)}', space=vmem, size = 0x9000, scoped, tag = 'internal scratch']
  #allocation2 [shape = 'f32[8,128]{1,0:T(8,128)}', space=vmem, size = 0x1000, scoped, tag = 'scratch operand']
  %s0 = inlined_call_operand.hbm [shape: f32[16,128], index: 0, kind: input, shape index: {}]
  %s1 = inlined_call_operand.hbm [shape: bf16[2,128,128], index: 1, kind: input, shape index: {}]
  %s2 = inlined_call_operand.hbm [shape: f32[2,1,128], index: 2, kind: input, shape index: {}]
  %s3 = inlined_call_operand.vmem [shape: f32[1,128], index: 3, kind: input, shape index: {}]
  %s4 = inlined_call_operand.vmem [shape: f32[1,128], index: 4, kind: input, shape index: {}]
  %s5 = inlined_call_operand.hbm [shape: f32[16,128], index: 5, kind: output, shape index: {}]
  %s6 = sld [smem:[#allocation0]]
  $region73: #{tpu_custom_call.1} parent=0
    _
  %s8 = ssub.s32 1, %s6
  %s9 = scalar_select 0, %s8, %s6
  $region1: #{tpu_custom_call.1} parent=0
    #allocation3 [shape = 'u8[8192]{0}', space=vmem, size = 0x2000, scoped, tag = 'input window, operand 0']
    #allocation4 [shape = 's32[2]{0}', space=sflag, size = 0x8, scoped, tag = 'scoped memory for tpu_custom_call.1']
    #allocation5 [shape = 's32[2]{0}', space=sflag, size = 0x8, scoped, tag = 'scoped memory for tpu_custom_call.1']
    #allocation6 [shape = 'u8[65536]{0}', space=vmem, size = 0x10000, scoped, tag = 'input window, operand 1']
    #allocation7 [shape = 's32[2]{0}', space=sflag, size = 0x8, scoped, tag = 'scoped memory for tpu_custom_call.1']
    #allocation8 [shape = 'u8[1024]{0}', space=vmem, size = 0x400, scoped, tag = 'input window, operand 2']
    #allocation9 [shape = 'u8[8192]{0}', space=vmem, size = 0x2000, scoped, tag = 'output window, operand 0']
    %10 = vsyncpa [#allocation4], 0
    %s11 = scalar_lea.sflag [#allocation4], 1
    %12 = vsyncpa %s11, 0
    %13 = vsyncpa [#allocation7], 0
    %s14 = scalar_lea.sflag [#allocation7], 1
    %15 = vsyncpa %s14, 0
    %16 = vsyncpa [#allocation5], 0
    %s17 = scalar_lea.sflag [#allocation5], 1
    %18 = vsyncpa %s17, 0
    loop: start=0, step=1, limit=6
    $region2: #{tpu_custom_call.1} parent=1 // loop_pre_header
      _
    $region3: #{tpu_custom_call.1} parent=1 // loop_header
      %s20 = sphi 0, %s24
      %p21 = scmp.ge.s32.totalorder %s20, 6
      %s27 = sphi 0, %s39
      %s28 = sphi 0, %s35
      %s29 = sphi 0, %s27
      %s30 = sphi 0, %s28
      %s31 = sphi 0, %s29
      %s32 = sphi 0, %s30
      %s42 = sphi 0, %s44
      %s45 = sphi 0, %s42
      %s46 = sphi 0, %s45
      %s62 = sphi 0, %s46
      %s68 = sphi 0, %s70
      %s71 = sphi 0, %s68
      %s72 = sphi 0, %s71
      %s88 = sphi 0, %s72
      %s94 = sphi 0, %s96
      %s97 = sphi 0, %s94
      %s98 = sphi 0, %s97
      %s114 = sphi 0, %s98
      %s118 = sphi 0, %s118
      %s120 = sphi 0, %s118
      %s121 = sphi 0, %s120
      %s135 = sphi 0, %s121
      %s139 = sphi 0, %s139
      %s141 = sphi 0, %s139
      %s142 = sphi 0, %s141
      %s156 = sphi 0, %s142
      %s162 = sphi 0, %s164
      %s165 = sphi 0, %s162
      %s166 = sphi 0, %s165
      %s182 = sphi 0, %s166
    $region4: #{tpu_custom_call.1} parent=1 // loop_header_branch
      %23 = sbr.rel (%p21) target = $region8
    $region5: #{tpu_custom_call.1} parent=1 // loop_body
      %s25 = ssub.s32 %s20, 1
      %s26 = ssub.s32 %s20, 2
      %s33 = sadd.s32 1, %s28
      %p34 = scmp.ge.s32.totalorder %s33, 2
      %s35 = scalar_select %p34, 0, %s33
      %s36 = sadd.s32 1, %s27
      %s37 = scalar_select %p34, %s36, %s27
      %p38 = scmp.ge.s32.totalorder %s37, 2
      %s39 = scalar_select %p38, 0, %s37
      %s40 = ssub.s32 %s27, %s39
      %p41 = scmp.eq.s32.totalorder %s40, 0
      %s43 = sadd.s32 %s42, 1
      %s44 = scalar_select %p41, %s42, %s43
      %p47 = pneg %p41
      %p48 = scmp.eq.s32.totalorder %s20, 3
      %p49 = por %p47, %p48
      %p50 = scmp.ne.s32.totalorder %s42, %s45
      %p51 = scmp.eq.s32.totalorder %s20, 0
      %p52 = por %p50, %p51
      %p53 = scmp.ne.s32.totalorder %s42, %s45
      %p54 = scmp.eq.s32.totalorder %s25, 3
      %p55 = por %p53, %p54
      %p56 = scmp.ne.s32.totalorder %s45, %s46
      %p57 = scmp.eq.s32.totalorder %s25, 0
      %p58 = por %p56, %p57
      %p59 = scmp.ne.s32.totalorder %s45, %s46
      %p60 = scmp.eq.s32.totalorder %s26, 3
      %p61 = por %p59, %p60
      %p63 = scmp.ne.s32.totalorder %s46, %s62
      %p64 = scmp.eq.s32.totalorder %s26, 0
      %p65 = por %p63, %p64
      %s66 = ssub.s32 %s28, %s35
      %p67 = scmp.eq.s32.totalorder %s66, 0
      %s69 = sadd.s32 %s68, 1
      %s70 = scalar_select %p67, %s68, %s69
      %p73 = pneg %p67
      %p74 = scmp.eq.s32.totalorder %s20, 3
      %p75 = por %p73, %p74
      %p76 = scmp.ne.s32.totalorder %s68, %s71
      %p77 = scmp.eq.s32.totalorder %s20, 0
      %p78 = por %p76, %p77
      %p79 = scmp.ne.s32.totalorder %s68, %s71
      %p80 = scmp.eq.s32.totalorder %s25, 3
      %p81 = por %p79, %p80
      %p82 = scmp.ne.s32.totalorder %s71, %s72
      %p83 = scmp.eq.s32.totalorder %s25, 0
      %p84 = por %p82, %p83
      %p85 = scmp.ne.s32.totalorder %s71, %s72
      %p86 = scmp.eq.s32.totalorder %s26, 3
      %p87 = por %p85, %p86
      %p89 = scmp.ne.s32.totalorder %s72, %s88
      %p90 = scmp.eq.s32.totalorder %s26, 0
      %p91 = por %p89, %p90
      %s92 = ssub.s32 %s28, %s35
      %p93 = scmp.eq.s32.totalorder %s92, 0
      %s95 = sadd.s32 %s94, 1
      %s96 = scalar_select %p93, %s94, %s95
      %p99 = pneg %p93
      %p100 = scmp.eq.s32.totalorder %s20, 3
      %p101 = por %p99, %p100
      %p102 = scmp.ne.s32.totalorder %s94, %s97
      %p103 = scmp.eq.s32.totalorder %s20, 0
      %p104 = por %p102, %p103
      %p105 = scmp.ne.s32.totalorder %s94, %s97
      %p106 = scmp.eq.s32.totalorder %s25, 3
      %p107 = por %p105, %p106
      %p108 = scmp.ne.s32.totalorder %s97, %s98
      %p109 = scmp.eq.s32.totalorder %s25, 0
      %p110 = por %p108, %p109
      %p111 = scmp.ne.s32.totalorder %s97, %s98
      %p112 = scmp.eq.s32.totalorder %s26, 3
      %p113 = por %p111, %p112
      %p115 = scmp.ne.s32.totalorder %s98, %s114
      %p116 = scmp.eq.s32.totalorder %s26, 0
      %p117 = por %p115, %p116
      %s119 = sadd.s32 %s118, 1
      %p122 = scmp.eq.s32.totalorder %s20, 3
      %p123 = scmp.ne.s32.totalorder %s118, %s120
      %p124 = scmp.eq.s32.totalorder %s20, 0
      %p125 = por %p123, %p124
      %p126 = scmp.ne.s32.totalorder %s118, %s120
      %p127 = scmp.eq.s32.totalorder %s25, 3
      %p128 = por %p126, %p127
      %p129 = scmp.ne.s32.totalorder %s120, %s121
      %p130 = scmp.eq.s32.totalorder %s25, 0
      %p131 = por %p129, %p130
      %p132 = scmp.ne.s32.totalorder %s120, %s121
      %p133 = scmp.eq.s32.totalorder %s26, 3
      %p134 = por %p132, %p133
      %p136 = scmp.ne.s32.totalorder %s121, %s135
      %p137 = scmp.eq.s32.totalorder %s26, 0
      %p138 = por %p136, %p137
      %s140 = sadd.s32 %s139, 1
      %p143 = scmp.eq.s32.totalorder %s20, 3
      %p144 = scmp.ne.s32.totalorder %s139, %s141
      %p145 = scmp.eq.s32.totalorder %s20, 0
      %p146 = por %p144, %p145
      %p147 = scmp.ne.s32.totalorder %s139, %s141
      %p148 = scmp.eq.s32.totalorder %s25, 3
      %p149 = por %p147, %p148
      %p150 = scmp.ne.s32.totalorder %s141, %s142
      %p151 = scmp.eq.s32.totalorder %s25, 0
      %p152 = por %p150, %p151
      %p153 = scmp.ne.s32.totalorder %s141, %s142
      %p154 = scmp.eq.s32.totalorder %s26, 3
      %p155 = por %p153, %p154
      %p157 = scmp.ne.s32.totalorder %s142, %s156
      %p158 = scmp.eq.s32.totalorder %s26, 0
      %p159 = por %p157, %p158
      %s160 = ssub.s32 %s27, %s39
      %p161 = scmp.eq.s32.totalorder %s160, 0
      %s163 = sadd.s32 %s162, 1
      %s164 = scalar_select %p161, %s162, %s163
      %p167 = pneg %p161
      %p168 = scmp.eq.s32.totalorder %s20, 3
      %p169 = por %p167, %p168
      %p170 = scmp.ne.s32.totalorder %s162, %s165
      %p171 = scmp.eq.s32.totalorder %s20, 0
      %p172 = por %p170, %p171
      %p173 = scmp.ne.s32.totalorder %s162, %s165
      %p174 = scmp.eq.s32.totalorder %s25, 3
      %p175 = por %p173, %p174
      %p176 = scmp.ne.s32.totalorder %s165, %s166
      %p177 = scmp.eq.s32.totalorder %s25, 0
      %p178 = por %p176, %p177
      %p179 = scmp.ne.s32.totalorder %s165, %s166
      %p180 = scmp.eq.s32.totalorder %s26, 3
      %p181 = por %p179, %p180
      %p183 = scmp.ne.s32.totalorder %s166, %s182
      %p184 = scmp.eq.s32.totalorder %s26, 0
      %p185 = por %p183, %p184
      %p186 = scmp.le.s32.totalorder 1, %s20
      %p187 = scmp.lt.s32.totalorder %s20, 5
      %p188 = pnand %p186, %p187
      %p189 = pneg %p188
      // Predicated region
      $region9: #{tpu_custom_call.1} parent=5 // pred_check
        _
      $region10: #{tpu_custom_call.1} parent=5 // pred_check_branch
        %191 = sbr.rel (%p188) target = $region12
      $region11: #{tpu_custom_call.1} parent=5 // pred_region
        %s192 = ssub.s32 %s20, 1
        // Predicated region
        $region13: #{tpu_custom_call.1} parent=11 // pred_check
          %p193 = pneg %p131
        $region14: #{tpu_custom_call.1} parent=11 // pred_check_branch
          %195 = sbr.rel (%p193) target = $region16
        $region15: #{tpu_custom_call.1} parent=11 // pred_region
          _
        $region16: #{tpu_custom_call.1} parent=11 // pred_fallthru
          _
        // Predicated region
        $region17: #{tpu_custom_call.1} parent=11 // pred_check
          %p196 = pneg %p152
        $region18: #{tpu_custom_call.1} parent=11 // pred_check_branch
          %198 = sbr.rel (%p196) target = $region20
        $region19: #{tpu_custom_call.1} parent=11 // pred_region
          _
        $region20: #{tpu_custom_call.1} parent=11 // pred_fallthru
          _
      $region12: #{tpu_custom_call.1} parent=5 // pred_fallthru
        _
      %p199 = scmp.lt.s32.totalorder %s20, 4
      // Predicated region
      $region21: #{tpu_custom_call.1} parent=5 // pred_check
        %p200 = pneg %p199
      $region22: #{tpu_custom_call.1} parent=5 // pred_check_branch
        %202 = sbr.rel (%p200) target = $region24
      $region23: #{tpu_custom_call.1} parent=5 // pred_region
        // Predicated region
        $region25: #{tpu_custom_call.1} parent=23 // pred_check
          %p203 = pneg %p52
        $region26: #{tpu_custom_call.1} parent=23 // pred_check_branch
          %205 = sbr.rel (%p203) target = $region28
        $region27: #{tpu_custom_call.1} parent=23 // pred_region
          %s206 = sand.u32 %s42, 1
          %s207 = scalar_lea.sflag [#allocation4], %s206
          %s208 = sand.u32 %s42, 1
          %s209 = smul.addr %s208, 8
          %s210 = scalar_lea.vmem [#allocation3], %s209
          %212 = vsyncadd %s207, 0
          %s213 = smul.addr %s27, 8
          %s214 = scalar_lea.hbm %s0, %s213
          %s216 = sshll.u32 %s214, 4
          %s217 = int_to_ptr.hbm [resolvable:$true] %s216
          %s218 = sshll.u32 %s210, 4
          %s219 = int_to_ptr.vmem [resolvable:$true] %s218
          %221 = dma.hbm_to_vmem [thread:$0]  %s217, 128, %s219, %s207
        $region28: #{tpu_custom_call.1} parent=23 // pred_fallthru
          _
        // Predicated region
        $region29: #{tpu_custom_call.1} parent=23 // pred_check
          %p222 = pneg %p78
        $region30: #{tpu_custom_call.1} parent=23 // pred_check_branch
          %224 = sbr.rel (%p222) target = $region32
        $region31: #{tpu_custom_call.1} parent=23 // pred_region
          %s225 = sand.u32 %s20, 1
          %s226 = scalar_lea.sflag [#allocation7], %s225
          %s227 = sand.u32 %s68, 1
          %s228 = smul.addr %s227, 64
          %s229 = scalar_lea.vmem [#allocation6], %s228
          %231 = vsyncadd %s226, 0
          %s232 = smul.addr %s28, 16
          %s233 = smul.addr %s232, 4
          %s234 = scalar_lea.hbm %s1, %s233
          %s235 = sshll.u32 %s234, 4
          %s236 = int_to_ptr.hbm [resolvable:$true] %s235
          %s237 = sshll.u32 %s229, 4
          %s238 = int_to_ptr.vmem [resolvable:$true] %s237
          %243 = dma.hbm_to_vmem [thread:$0]  %s236, 1024, %s238, %s226, 64, 64, 4
        $region32: #{tpu_custom_call.1} parent=23 // pred_fallthru
          _
        // Predicated region
        $region33: #{tpu_custom_call.1} parent=23 // pred_check
          %p244 = pneg %p104
        $region34: #{tpu_custom_call.1} parent=23 // pred_check_branch
          %246 = sbr.rel (%p244) target = $region36
        $region35: #{tpu_custom_call.1} parent=23 // pred_region
          %s247 = sand.u32 %s20, 1
          %s248 = scalar_lea.sflag [#allocation7], %s247
          %s249 = sand.u32 %s94, 1
          %s250 = scalar_lea.vmem [#allocation8], %s249
          %252 = vsyncadd %s248, 0
          %s253 = scalar_lea.hbm %s2, %s28
          %s255 = sshll.u32 %s253, 4
          %s256 = int_to_ptr.hbm [resolvable:$true] %s255
          %s257 = sshll.u32 %s250, 4
          %s258 = int_to_ptr.vmem [resolvable:$true] %s257
          %260 = dma.hbm_to_vmem [thread:$0]  %s256, 16, %s258, %s248
        $region36: #{tpu_custom_call.1} parent=23 // pred_fallthru
          _
      $region24: #{tpu_custom_call.1} parent=5 // pred_fallthru
        _
      %p261 = scmp.le.s32.totalorder 1, %s20
      %p262 = scmp.lt.s32.totalorder %s20, 5
      %p263 = pnand %p261, %p262
      %p264 = pneg %p263
      // Predicated region
      $region37: #{tpu_custom_call.1} parent=5 // pred_check
        _
      $region38: #{tpu_custom_call.1} parent=5 // pred_check_branch
        %266 = sbr.rel (%p263) target = $region40
      $region39: #{tpu_custom_call.1} parent=5 // pred_region
        %s267 = ssub.s32 %s20, 1
        %s268 = sand.u32 %s45, 1
        %s269 = scalar_lea.sflag [#allocation4], %s268
        %s270 = sand.u32 %s45, 1
        %s271 = smul.addr %s270, 8
        %s272 = scalar_lea.vmem [#allocation3], %s271
        // Predicated region
        $region41: #{tpu_custom_call.1} parent=39 // pred_check
          %p273 = pneg %p58
        $region42: #{tpu_custom_call.1} parent=39 // pred_check_branch
          %275 = sbr.rel (%p273) target = $region44
        $region43: #{tpu_custom_call.1} parent=39 // pred_region
          %277 = dma.done %s269, 128
        $region44: #{tpu_custom_call.1} parent=39 // pred_fallthru
          _
        %s278 = sand.u32 %s25, 1
        %s279 = scalar_lea.sflag [#allocation7], %s278
        %s280 = sand.u32 %s71, 1
        %s281 = smul.addr %s280, 64
        %s282 = scalar_lea.vmem [#allocation6], %s281
        // Predicated region
        $region45: #{tpu_custom_call.1} parent=39 // pred_check
          %p283 = pneg %p84
        $region46: #{tpu_custom_call.1} parent=39 // pred_check_branch
          %285 = sbr.rel (%p283) target = $region48
        $region47: #{tpu_custom_call.1} parent=39 // pred_region
          %287 = dma.done %s279, 1024
        $region48: #{tpu_custom_call.1} parent=39 // pred_fallthru
          _
        %s288 = sand.u32 %s25, 1
        %s289 = scalar_lea.sflag [#allocation7], %s288
        %s290 = sand.u32 %s97, 1
        %s291 = scalar_lea.vmem [#allocation8], %s290
        // Predicated region
        $region49: #{tpu_custom_call.1} parent=39 // pred_check
          %p292 = pneg %p110
        $region50: #{tpu_custom_call.1} parent=39 // pred_check_branch
          %294 = sbr.rel (%p292) target = $region52
        $region51: #{tpu_custom_call.1} parent=39 // pred_region
          %296 = dma.done %s289, 16
        $region52: #{tpu_custom_call.1} parent=39 // pred_fallthru
          _
        %s297 = sand.u32 %s45, 1
        %s298 = scalar_lea.sflag [#allocation4], %s297
        %s299 = sand.u32 %s45, 1
        %s300 = smul.addr %s299, 8
        %s301 = scalar_lea.vmem [#allocation3], %s300
        %p302 = pneg %p58
        %p303 = pneg %p55
        %s304 = sand.u32 %s25, 1
        %s305 = scalar_lea.sflag [#allocation7], %s304
        %s306 = sand.u32 %s71, 1
        %s307 = smul.addr %s306, 64
        %s308 = scalar_lea.vmem [#allocation6], %s307
        %p309 = pneg %p84
        %p310 = pneg %p81
        %s311 = sand.u32 %s25, 1
        %s312 = scalar_lea.sflag [#allocation7], %s311
        %s313 = sand.u32 %s97, 1
        %s314 = scalar_lea.vmem [#allocation8], %s313
        %p315 = pneg %p110
        %p316 = pneg %p107
        %p317 = pneg %p131
        %p318 = pneg %p128
        %p319 = pneg %p152
        %p320 = pneg %p149
        %p321 = pneg %p178
        %p322 = pneg %p175
        %s323 = sand.u32 %s165, 1
        %s324 = scalar_lea.sflag [#allocation5], %s323
        %s325 = sand.u32 %s165, 1
        %s326 = smul.addr %s325, 8
        %s327 = scalar_lea.vmem [#allocation9], %s326
        %p328 = scmp.eq.s32.totalorder %s30, 0
        // Predicated region
        $region53: #{tpu_custom_call.1} parent=39 // pred_check
          %p329 = pneg %p328
        $region54: #{tpu_custom_call.1} parent=39 // pred_check_branch
          %331 = sbr.rel (%p329) target = $region56
        $region55: #{tpu_custom_call.1} parent=39 // pred_region
          %v332 = vld [vmem:[%s272] sm:$0xff]
          %333 = vst [vmem:[#allocation2] sm:$0xff] %v332
        $region56: #{tpu_custom_call.1} parent=39 // pred_fallthru
          _
        %v334 = vld [vmem:[#allocation2] sm:$0xff]
        %335 = vadd.xlane.f32.xlu0 %v334
        %v336 = vpop.xlane.xlu0 %335
        %v337 = vrcp.pop 128.0
        %v338 = vmul.f32 128.0, %v337
        %v339 = vsub.f32 1.0, %v338
        %v340 = vmul.f32 %v337, %v339
        %v341 = vadd.f32 %v337, %v340
        %vm342 = vweird.f32 %v337
        %v343 = vsel %vm342, %v337, %v341
        %v344 = vmul.f32 %v336, %v343
        %v345 = vsub.f32 %v334, %v344
        %v346 = vmul.f32 %v345, %v345
        %347 = vadd.xlane.f32.xlu0 %v346
        %v348 = vpop.xlane.xlu0 %347
        %v349 = vmul.f32 %v348, 0.007874016
        %v350 = vrsqrt.pop %v349
        %v351 = vmul.f32 %v350, %v349
        %v352 = vmul.f32 %v351, %v350
        %v353 = vmul.f32 0.5, %v352
        %v354 = vsub.f32 1.5, %v353
        %v355 = vmul.f32 %v350, %v354
        %v356 = vmul.f32 %v349, %v355
        %vm357 = vcmp.eq.f32.partialorder %v349, inf
        %v358 = vsel %vm357, %v349, %v356
        %vm359 = vcmp.eq.f32.partialorder %v349, 0.0
        %v360 = vand.u32 %v349, 2147483648
        %v361 = vsel %vm359, %v360, %v358
        %v362 = vadd.f32 %v361, 1e-06
        %v363 = vrcp.pop %v362
        %v364 = vmul.f32 %v345, %v363
        %v365 = vpack.c.bf16 %v364, %v364
        %v366 = vld [vmem:[%s282] sm:$0xf]
        %v367 = vld [vmem:[%s282 + $0x4] sm:$0xf]
        %v368 = vld [vmem:[%s282 + $0x8] sm:$0xf]
        %v369 = vld [vmem:[%s282 + $0xc] sm:$0xf]
        %v370 = vld [vmem:[%s282 + $0x10] sm:$0xf]
        %v371 = vld [vmem:[%s282 + $0x14] sm:$0xf]
        %v372 = vld [vmem:[%s282 + $0x18] sm:$0xf]
        %v373 = vld [vmem:[%s282 + $0x1c] sm:$0xf]
        %v374 = vld [vmem:[%s282 + $0x20] sm:$0xf]
        %v375 = vld [vmem:[%s282 + $0x24] sm:$0xf]
        %v376 = vld [vmem:[%s282 + $0x28] sm:$0xf]
        %v377 = vld [vmem:[%s282 + $0x2c] sm:$0xf]
        %v378 = vld [vmem:[%s282 + $0x30] sm:$0xf]
        %v379 = vld [vmem:[%s282 + $0x34] sm:$0xf]
        %v380 = vld [vmem:[%s282 + $0x38] sm:$0xf]
        %v381 = vld [vmem:[%s282 + $0x3c] sm:$0xf]
        %v398 = vunpack.c.l.b16 %v366
        %v399 = vunpack.c.l.b16 %v367
        %v400 = vunpack.c.l.b16 %v368
        %v401 = vunpack.c.l.b16 %v369
        %v402 = vunpack.c.l.b16 %v370
        %v403 = vunpack.c.l.b16 %v371
        %v404 = vunpack.c.l.b16 %v372
        %v405 = vunpack.c.l.b16 %v373
        %v406 = vunpack.c.l.b16 %v374
        %v407 = vunpack.c.l.b16 %v375
        %v408 = vunpack.c.l.b16 %v376
        %v409 = vunpack.c.l.b16 %v377
        %v410 = vunpack.c.l.b16 %v378
        %v411 = vunpack.c.l.b16 %v379
        %v412 = vunpack.c.l.b16 %v380
        %v413 = vunpack.c.l.b16 %v381
        %v414 = vpack.c.b16 %v399, %v398
        %v415 = vpack.c.b16 %v401, %v400
        %v416 = vpack.c.b16 %v403, %v402
        %v417 = vpack.c.b16 %v405, %v404
        %v418 = vpack.c.b16 %v407, %v406
        %v419 = vpack.c.b16 %v409, %v408
        %v420 = vpack.c.b16 %v411, %v410
        %v421 = vpack.c.b16 %v413, %v412
        %430 = vmatpush.bf16.msra.mxu0 %v421
        %431 = vmatpush.bf16.msra.mxu0 %v420
        %432 = vmatpush.bf16.msra.mxu0 %v419
        %433 = vmatpush.bf16.msra.mxu0 %v418
        %434 = vmatpush.bf16.msra.mxu0 %v417
        %435 = vmatpush.bf16.msra.mxu0 %v416
        %436 = vmatpush.bf16.msra.mxu0 %v415
        %437 = vmatpush.bf16.msra.mxu0 %v414
        %438 = vmatmul.bf16.gmra.mxu0 %v365
        %v439 = vpop.f32.mrf.mxu0
        %v440 = vadd.f32 0.0, %v439
        %v441 = vpop.f32.mrf.mxu0
        %442 = vdwg.mxu0
        %v443 = vadd.f32 %v334, %v440
        %v444 = vld [vmem:[%s291] sm:$0x1]
        %v446 = vperm.slane %v444, 0
        %v448 = vadd.f32 %v443, %v446
        %449 = vst [vmem:[#allocation2] sm:$0xff] %v448
        %p450 = scmp.eq.s32.totalorder %s30, 1
        // Predicated region
        $region57: #{tpu_custom_call.1} parent=39 // pred_check
          %p451 = pneg %p450
        $region58: #{tpu_custom_call.1} parent=39 // pred_check_branch
          %453 = sbr.rel (%p451) target = $region60
        $region59: #{tpu_custom_call.1} parent=39 // pred_region
          %454 = vadd.xlane.f32.xlu0 %v448
          %v455 = vpop.xlane.xlu0 %454
          %v456 = vmul.f32 %v455, %v343
          %v457 = vsub.f32 %v448, %v456
          %v458 = vmul.f32 %v457, %v457
          %459 = vadd.xlane.f32.xlu0 %v458
          %v460 = vpop.xlane.xlu0 %459
          %v461 = vmul.f32 %v460, 0.007874016
          %v462 = vrsqrt.pop %v461
          %v463 = vmul.f32 %v462, %v461
          %v464 = vmul.f32 %v463, %v462
          %v465 = vmul.f32 0.5, %v464
          %v466 = vsub.f32 1.5, %v465
          %v467 = vmul.f32 %v462, %v466
          %v468 = vmul.f32 %v461, %v467
          %vm469 = vcmp.eq.f32.partialorder %v461, inf
          %v470 = vsel %vm469, %v461, %v468
          %vm471 = vcmp.eq.f32.partialorder %v461, 0.0
          %v472 = vand.u32 %v461, 2147483648
          %v473 = vsel %vm471, %v472, %v470
          %v474 = vadd.f32 %v473, 1e-06
          %v475 = vrcp.pop %v474
          %v476 = vld [vmem:[%s3] sm:$0x1]
          %v478 = vperm.slane %v476, 0
          %v480 = vmul.f32 %v478, %v457
          %v481 = vmul.f32 %v480, %v475
          %v482 = vld [vmem:[%s4] sm:$0x1]
          %v484 = vperm.slane %v482, 0
          %v486 = vadd.f32 %v481, %v484
          %487 = vst [vmem:[%s327] sm:$0xff] %v486
        $region60: #{tpu_custom_call.1} parent=39 // pred_fallthru
          _
        %s488 = sand.u32 %s165, 1
        %s489 = scalar_lea.sflag [#allocation5], %s488
        %s490 = sand.u32 %s165, 1
        %s491 = smul.addr %s490, 8
        %s492 = scalar_lea.vmem [#allocation9], %s491
        // Predicated region
        $region61: #{tpu_custom_call.1} parent=39 // pred_check
          %p493 = pneg %p175
        $region62: #{tpu_custom_call.1} parent=39 // pred_check_branch
          %495 = sbr.rel (%p493) target = $region64
        $region63: #{tpu_custom_call.1} parent=39 // pred_region
          %497 = vsyncadd %s489, 0
          %s498 = smul.addr %s29, 8
          %s499 = scalar_lea.hbm %s5, %s498
          %s501 = sshll.u32 %s492, 4
          %s502 = int_to_ptr.vmem [resolvable:$true] %s501
          %s503 = sshll.u32 %s499, 4
          %s504 = int_to_ptr.hbm [resolvable:$true] %s503
          %506 = dma.vmem_to_hbm [thread:$0]  %s502, 128, %s504, %s489
        $region64: #{tpu_custom_call.1} parent=39 // pred_fallthru
          _
      $region40: #{tpu_custom_call.1} parent=5 // pred_fallthru
        _
      %p507 = scmp.le.s32.totalorder 2, %s20
      // Predicated region
      $region65: #{tpu_custom_call.1} parent=5 // pred_check
        %p508 = pneg %p507
      $region66: #{tpu_custom_call.1} parent=5 // pred_check_branch
        %510 = sbr.rel (%p508) target = $region68
      $region67: #{tpu_custom_call.1} parent=5 // pred_region
        %s511 = ssub.s32 %s20, 2
        // Predicated region
        $region69: #{tpu_custom_call.1} parent=67 // pred_check
          %p512 = pneg %p181
        $region70: #{tpu_custom_call.1} parent=67 // pred_check_branch
          %514 = sbr.rel (%p512) target = $region72
        $region71: #{tpu_custom_call.1} parent=67 // pred_region
          %s515 = sand.u32 %s166, 1
          %s516 = scalar_lea.sflag [#allocation5], %s515
          %s517 = sand.u32 %s166, 1
          %s518 = smul.addr %s517, 8
          %s519 = scalar_lea.vmem [#allocation9], %s518
          %521 = dma.done %s516, 128
        $region72: #{tpu_custom_call.1} parent=67 // pred_fallthru
          _
      $region68: #{tpu_custom_call.1} parent=5 // pred_fallthru
        _
    $region6: #{tpu_custom_call.1} parent=1 // loop_footer
      %s24 = sadd.s32 1, %s20
    $region7: #{tpu_custom_call.1} parent=1 // loop_footer_branch
      %19 = sbr.rel target = $region3
    $region8: #{tpu_custom_call.1} parent=1 // loop_exit
      _
    %522 = vsyncpa [#allocation4], 1
    %s523 = scalar_lea.sflag [#allocation4], 1
    %524 = vsyncpa %s523, 1
    %525 = vsyncpa [#allocation7], 1
    %s526 = scalar_lea.sflag [#allocation7], 1
    %527 = vsyncpa %s526, 1
    %528 = vsyncpa [#allocation5], 1
    %s529 = scalar_lea.sflag [#allocation5], 1
    %530 = vsyncpa %s529, 1

</llo_original>
